<compile_context>
chip_gen: v6e
topology: v6e:2x2x1
jax: 0.10.0
libtpu: 0.0.40
codegen_flags: <defaults>
</compile_context>

<pallas_src>
import jax
import jax.numpy as jnp
from jax.experimental import pallas as pl
from jax.experimental.pallas import tpu as pltpu


# ---------------------------------------------------------------------------
# Kernel factory (closure over static tiling facts)
# ---------------------------------------------------------------------------
def _make_atlas_kernel(single_t, t_tile, t_total):
    def kernel(ta_ref, curv_ref,
               w1a_ref, w1b_cs_ref, b1_ref,
               w23_ref, b23_ref,
               w4_ref, b4_ref,
               integ_ref, perf_ref,
               acc_ref):
        bt = ta_ref.shape[0]
        s_dim = ta_ref.shape[2]

        # ---- sequence reduction: per-t accumulation on the VALU ----
        # Each slice is cast bf16->f32 as it is consumed (no whole-tile f32
        # relayout) and the sum stays on the 4-wide VALU instead of the XLU.
        if single_t:
            partial = ta_ref[:, 0, :].astype(jnp.float32)
            for t in range(1, t_tile):
                partial = partial + ta_ref[:, t, :].astype(jnp.float32)
        else:
            t_idx = pl.program_id(1)
            base = t_idx * t_tile
            partial = jnp.zeros((bt, s_dim), jnp.float32)
            for t in range(t_tile):
                sl = ta_ref[:, t, :].astype(jnp.float32)
                valid = (base + t) < t_total          # mask OOB rows of last T block
                partial = partial + jnp.where(valid, sl, 0.0)

            @pl.when(t_idx == 0)
            def _():
                acc_ref[...] = partial

            @pl.when(t_idx > 0)
            def _():
                acc_ref[...] = acc_ref[...] + partial

        # ---- Phase-5 MLPs, executed once per batch tile ----
        def finalize(synth_sum):
            curv = curv_ref[...].astype(jnp.float32)              # [bt, 1]
            # cat([synth, manifold], -1) @ W1 == synth @ W1a + curv * colsum(W1b)
            h1 = (jnp.dot(synth_sum, w1a_ref[...],
                          preferred_element_type=jnp.float32)
                  + curv * w1b_cs_ref[...]
                  + b1_ref[...])
            h1 = jnp.maximum(h1, 0.0)
            # fused layer 2 + layer 3: [integ | pre-ReLU h2] in one MXU pass
            fused = jnp.dot(h1, w23_ref[...],
                            preferred_element_type=jnp.float32) + b23_ref[...]
            s_out = integ_ref.shape[1]
            integ = fused[:, :s_out]
            h2 = jnp.maximum(fused[:, s_out:], 0.0)
            integ_ref[...] = integ.astype(integ_ref.dtype)
            # 1-wide tail stays off the MXU: VPU multiply + lane reduce,
            # scalar bias from SMEM, narrow [bt, 1] store.
            logit = jnp.sum(h2 * w4_ref[...], axis=-1, keepdims=True) + b4_ref[0, 0]
            perf_ref[...] = jax.nn.sigmoid(logit).astype(perf_ref.dtype)

        if single_t:
            finalize(partial)
        else:
            @pl.when(pl.program_id(1) == pl.num_programs(1) - 1)
            def _():
                finalize(acc_ref[...])

    return kernel


# ---------------------------------------------------------------------------
# Tiling / VMEM-budget selection (per-generation safe)
# ---------------------------------------------------------------------------
def _choose_tiles(B, T, S, hidden, act_itemsize, integ_itemsize,
                  vmem_budget_bytes=28 * 1024 * 1024):
    """Pick (batch_tile, t_tile, vmem_limit_bytes).

    The working-set target (~28 MiB: double-buffered activation + output tiles
    plus resident weights) is safe on every generation: well under v7x's 64 MiB
    physical VMEM, and the explicit vmem_limit_bytes lifts v5e's 16 MiB default
    scoped limit so the big tiles actually compile there.
    """
    weight_bytes = 4 * (S * S + 2 * S + S * (S + hidden) + (S + hidden) + hidden + 1)
    avail = vmem_budget_bytes - weight_bytes - (256 * 1024)       # margin

    def per_row_bytes(tt):
        return (2 * tt * S * act_itemsize       # double-buffered activation tile
                + 2 * 4                         # curvature
                + 2 * S * integ_itemsize        # integrated output
                + 2 * 4                         # performance output
                + S * 4)                        # f32 reduction scratch

    # Prefer a single T block (no grid reduction) if it still supports >= 8 rows.
    tt = T
    bt = avail // per_row_bytes(tt)
    if bt < 8 and T > 8:
        # long sequence: tile T (multiple of 8, bounded unroll) so bt can stay >= 8
        fixed = per_row_bytes(0)
        tt_budget = (avail // 8 - fixed) // max(1, 2 * S * act_itemsize)
        tt = int(max(8, min(T, (int(tt_budget) // 8) * 8, 64)))
        bt = avail // per_row_bytes(tt)

    bt = max(1, int(bt))
    if B >= 16:
        # guarantee >= 2 steps on the parallel axis so both v7x TCs get work
        half = -(-B // 2)
        bt = min(bt, ((half + 7) // 8) * 8)
    if bt >= B:
        bt = B
    else:
        bt = max(8, (bt // 8) * 8)              # keep (8,128)-friendly partial grids
        if bt >= B:
            bt = B

    est = weight_bytes + bt * per_row_bytes(tt) + (1 << 20)
    vmem_limit = int(min(max(est + (8 << 20), 16 << 20), 48 << 20))
    return int(bt), int(tt), vmem_limit


# ---------------------------------------------------------------------------
# Wrapper
# ---------------------------------------------------------------------------
def atlas_integrate(thought_activations, scalar_curvature, params,
                    *, synthesis_dim, manifold_dim,
                    batch_tile=None, t_tile=None,
                    integ_dtype=jnp.float32, perf_dtype=jnp.float32):
    """Runs the ATLAS integration / performance-monitor hot path in Pallas."""
    B, T, S = thought_activations.shape
    assert S == synthesis_dim
    hidden = synthesis_dim // 4

    # ---- wrapper-side algebra / layout prep (one-time, outside the hot loop) ----
    w1a_over_t = params["w1a"] * (1.0 / T)                        # fold the mean's 1/T
    w1b_colsum = jnp.sum(params["w1b"], axis=0, keepdims=True)    # [1, S]: manifold@W1b == curv*colsum
    # fuse layers 2 & 3 of the glue: one matmul yields [integ | pre-ReLU h2]
    w23 = jnp.concatenate([params["w2"], params["w2"] @ params["w3"]], axis=1)   # [S, S+hidden]
    b23 = jnp.concatenate([params["b2"], params["b2"] @ params["w3"] + params["b3"]], axis=1)
    w4_row = params["w4"].T                                       # [1, hidden] for the VPU tail

    if batch_tile is None or t_tile is None:
        auto_bt, auto_tt, vmem_limit = _choose_tiles(
            B, T, S, hidden,
            thought_activations.dtype.itemsize, jnp.dtype(integ_dtype).itemsize)
        bt = batch_tile if batch_tile is not None else auto_bt
        tt = t_tile if t_tile is not None else auto_tt
    else:
        bt, tt = batch_tile, t_tile
        vmem_limit = 32 << 20
    bt = min(bt, B)
    tt = min(tt, T)
    single_t = (tt == T)

    nb = pl.cdiv(B, bt)
    nt = pl.cdiv(T, tt)
    grid = (nb, nt)

    # Advisory cost estimate for XLA's scheduler.
    flops = (2 * B * T * S                    # sequence reduction
             + 2 * B * S * S                  # layer 1 matmul
             + 2 * B * S * (S + hidden)       # fused layer 2+3 matmul
             + 2 * B * hidden)                # VPU tail dot
    weight_bytes = 4 * (w1a_over_t.size + w1b_colsum.size + params["b1"].size
                        + w23.size + b23.size + w4_row.size + params["b4"].size)
    bytes_accessed = (thought_activations.size * thought_activations.dtype.itemsize
                      + scalar_curvature.size * scalar_curvature.dtype.itemsize
                      + weight_bytes
                      + B * S * jnp.dtype(integ_dtype).itemsize
                      + B * jnp.dtype(perf_dtype).itemsize)
    cost = pl.CostEstimate(flops=flops, transcendentals=B,
                           bytes_accessed=bytes_accessed)

    kernel = _make_atlas_kernel(single_t, tt, T)

    integrated, performance = pl.pallas_call(
        kernel,
        grid=grid,
        out_shape=(
            jax.ShapeDtypeStruct((B, synthesis_dim), integ_dtype),
            jax.ShapeDtypeStruct((B, 1), perf_dtype),             # true [B,1]; masked store is hidden
        ),
        in_specs=[
            pl.BlockSpec((bt, tt, S), lambda i, j: (i, j, 0)),    # thought_activations (streamed)
            pl.BlockSpec((bt, 1), lambda i, j: (i, 0)),           # scalar_curvature
            pl.BlockSpec((S, S), lambda i, j: (0, 0)),            # W1a / T   (VMEM-resident)
            pl.BlockSpec((1, S), lambda i, j: (0, 0)),            # colsum(W1b)
            pl.BlockSpec((1, S), lambda i, j: (0, 0)),            # b1
            pl.BlockSpec((S, S + hidden), lambda i, j: (0, 0)),   # fused W23
            pl.BlockSpec((1, S + hidden), lambda i, j: (0, 0)),   # fused b23
            pl.BlockSpec((1, hidden), lambda i, j: (0, 0)),       # W4 row
            pl.BlockSpec((1, 1), lambda i, j: (0, 0),
                         memory_space=pltpu.MemorySpace.SMEM),    # b4 scalar
        ],
        out_specs=(
            pl.BlockSpec((bt, synthesis_dim), lambda i, j: (i, 0)),
            pl.BlockSpec((bt, 1), lambda i, j: (i, 0)),
        ),
        scratch_shapes=[pltpu.VMEM((bt, synthesis_dim), jnp.float32)],  # T-axis accumulator
        compiler_params=pltpu.CompilerParams(
            dimension_semantics=("parallel", "arbitrary"),        # batch shards across v7x's 2 TCs
            vmem_limit_bytes=vmem_limit),
        cost_estimate=cost,
    )(thought_activations, scalar_curvature,
      w1a_over_t, w1b_colsum, params["b1"],
      w23, b23,
      w4_row, params["b4"])

    return integrated, performance


# ---------------------------------------------------------------------------
# Deterministic parameter init (PyTorch nn.Linear-style uniform bounds).
# Weights stored as [in_features, out_features] so the math is x @ W.
# ---------------------------------------------------------------------------
def _init_linear(key, fan_in, fan_out):
    kw, kb = jax.random.split(key)
    bound = 1.0 / (fan_in ** 0.5)
    w = jax.random.uniform(kw, (fan_in, fan_out), jnp.float32, -bound, bound)
    b = jax.random.uniform(kb, (1, fan_out), jnp.float32, -bound, bound)
    return w, b


def make_params(key, synthesis_dim, manifold_dim):
    k1, k2, k3, k4 = jax.random.split(key, 4)
    hidden = synthesis_dim // 4
    # cognitive_integrator layer 1: Linear(synthesis_dim + manifold_dim, synthesis_dim)
    w1, b1 = _init_linear(k1, synthesis_dim + manifold_dim, synthesis_dim)
    w1a, w1b = w1[:synthesis_dim], w1[synthesis_dim:]   # split for the concat-free matmul
    # cognitive_integrator layer 2: Linear(synthesis_dim, synthesis_dim)
    w2, b2 = _init_linear(k2, synthesis_dim, synthesis_dim)
    # performance_monitor: Linear(synthesis_dim, synthesis_dim//4), Linear(.., 1)
    w3, b3 = _init_linear(k3, synthesis_dim, hidden)
    w4, b4 = _init_linear(k4, hidden, 1)
    return dict(w1a=w1a, w1b=w1b, b1=b1, w2=w2, b2=b2,
                w3=w3, b3=b3, w4=w4, b4=b4)


# Pure-JAX reference implementing the exact original Phase-5 math.
def _reference(thought_activations, scalar_curvature, params, manifold_dim):
    synth = thought_activations.astype(jnp.float32).mean(axis=1)
    manifold = jnp.broadcast_to(scalar_curvature.astype(jnp.float32),
                                (synth.shape[0], manifold_dim))
    cat = jnp.concatenate([synth, manifold], axis=-1)
    w1 = jnp.concatenate([params["w1a"], params["w1b"]], axis=0)
    h1 = jax.nn.relu(cat @ w1 + params["b1"])
    integ = h1 @ params["w2"] + params["b2"]
    h2 = jax.nn.relu(integ @ params["w3"] + params["b3"])
    perf = jax.nn.sigmoid(h2 @ params["w4"] + params["b4"])
    return integ, perf


if __name__ == "__main__":
    # AtlasConfig defaults force thought_dim == manifold_dim == synthesis_dim == 128.
    synthesis_dim = 128
    manifold_dim = 128
    batch, seq = 2, 8

    key = jax.random.PRNGKey(0)
    k_tok, k_ta, k_curv, k_par = jax.random.split(key, 4)

    # Synthetic inputs consistent with ATLAS.forward's glue:
    input_tokens = jax.random.randint(k_tok, (batch, seq), 0, 50000)       # [B, T] (Phase 1-4 input, unused here)
    thought_activations = jax.random.normal(k_ta, (batch, seq, synthesis_dim),
                                            jnp.float32)                   # synthesis_results['thought_activations']
    scalar_curvature = jax.random.normal(k_curv, (batch, 1), jnp.float32)  # manifold_state['scalar_curvature']

    params = make_params(k_par, synthesis_dim, manifold_dim)

    # bf16 activation stream is the default call-site dtype: it halves HBM bytes
    # on the dominant [B,T,S] read while the kernel still accumulates in f32.
    ta_bf16 = thought_activations.astype(jnp.bfloat16)
    integ_bf, perf_bf = atlas_integrate(ta_bf16, scalar_curvature, params,
                                        synthesis_dim=synthesis_dim,
                                        manifold_dim=manifold_dim)
    jax.block_until_ready((integ_bf, perf_bf))
    ref_integ_bf, ref_perf_bf = _reference(ta_bf16.astype(jnp.float32),
                                           scalar_curvature, params, manifold_dim)
    assert integ_bf.shape == (batch, synthesis_dim)
    assert perf_bf.shape == (batch, 1)
    assert jnp.allclose(integ_bf, ref_integ_bf, atol=1e-3, rtol=1e-3)
    assert jnp.allclose(perf_bf, ref_perf_bf, atol=1e-3, rtol=1e-3)

    # f32 path (matches the PyTorch module's dtype exactly).
    integ, perf = atlas_integrate(thought_activations, scalar_curvature, params,
                                  synthesis_dim=synthesis_dim,
                                  manifold_dim=manifold_dim)
    jax.block_until_ready((integ, perf))
    ref_integ, ref_perf = _reference(thought_activations, scalar_curvature,
                                     params, manifold_dim)
    assert jnp.allclose(integ, ref_integ, atol=1e-4, rtol=1e-4)
    assert jnp.allclose(perf, ref_perf, atol=1e-4, rtol=1e-4)

    # Exercise the long-sequence / T-tiled reduction path (grid T axis > 1).
    long_T = 24
    ta_long = jax.random.normal(jax.random.PRNGKey(7),
                                (batch, long_T, synthesis_dim), jnp.float32)
    integ_l, perf_l = atlas_integrate(ta_long, scalar_curvature, params,
                                      synthesis_dim=synthesis_dim,
                                      manifold_dim=manifold_dim,
                                      t_tile=8)
    jax.block_until_ready((integ_l, perf_l))
    ref_integ_l, ref_perf_l = _reference(ta_long, scalar_curvature, params, manifold_dim)
    assert jnp.allclose(integ_l, ref_integ_l, atol=1e-4, rtol=1e-4)
    assert jnp.allclose(perf_l, ref_perf_l, atol=1e-4, rtol=1e-4)

    print("KERNEL_OK")
</pallas_src>

<mosaic_0001>
module attributes {stable_mosaic.version = 11 : i64} {
  func.func @kernel(%arg0: i32, %arg1: i32, %arg2: memref<2x8x128xbf16, #tpu.memory_space<vmem>>, %arg3: memref<2x1xf32, #tpu.memory_space<vmem>>, %arg4: memref<128x128xf32, #tpu.memory_space<vmem>>, %arg5: memref<1x128xf32, #tpu.memory_space<vmem>>, %arg6: memref<1x128xf32, #tpu.memory_space<vmem>>, %arg7: memref<128x160xf32, #tpu.memory_space<vmem>>, %arg8: memref<1x160xf32, #tpu.memory_space<vmem>>, %arg9: memref<1x32xf32, #tpu.memory_space<vmem>>, %arg10: memref<1x1xf32, #tpu.memory_space<smem>>, %arg11: memref<2x128xf32, #tpu.memory_space<vmem>>, %arg12: memref<2x1xf32, #tpu.memory_space<vmem>>, %arg13: memref<2x128xf32, #tpu.memory_space<vmem>>) attributes {dimension_semantics = [#tpu.dimension_semantics<parallel>, #tpu.dimension_semantics<arbitrary>], iteration_bounds = array<i64: 1, 1>, scalar_prefetch = 0 : i64, scratch_operands = 1 : i64, tpu.core_type = #tpu.core_type<tc>, window_params = [{transform_indices = @transform_0, window_bounds = array<i64: 2, 8, 128>}, {transform_indices = @transform_1, window_bounds = array<i64: 2, 1>}, {pipeline_mode = #tpu.pipeline_mode<synchronous>, transform_indices = @transform_2, window_bounds = array<i64: 128, 128>}, {pipeline_mode = #tpu.pipeline_mode<synchronous>, transform_indices = @transform_3, window_bounds = array<i64: 1, 128>}, {pipeline_mode = #tpu.pipeline_mode<synchronous>, transform_indices = @transform_4, window_bounds = array<i64: 1, 128>}, {pipeline_mode = #tpu.pipeline_mode<synchronous>, transform_indices = @transform_5, window_bounds = array<i64: 128, 160>}, {pipeline_mode = #tpu.pipeline_mode<synchronous>, transform_indices = @transform_6, window_bounds = array<i64: 1, 160>}, {pipeline_mode = #tpu.pipeline_mode<synchronous>, transform_indices = @transform_7, window_bounds = array<i64: 1, 32>}, {transform_indices = @transform_8, window_bounds = array<i64: 1, 1>}, {transform_indices = @transform_9, window_bounds = array<i64: 2, 128>}, {transform_indices = @transform_10, window_bounds = array<i64: 2, 1>}]} {
    %c0 = arith.constant 0 : index
    %c0_0 = arith.constant 0 : index
    %c0_1 = arith.constant 0 : index
    %0 = vector.load %arg2[%c0, %c0_0, %c0_1] : memref<2x8x128xbf16, #tpu.memory_space<vmem>>, vector<2x1x128xbf16>
    %1 = vector.shape_cast %0 : vector<2x1x128xbf16> to vector<2x128xbf16>
    %2 = arith.extf %1 : vector<2x128xbf16> to vector<2x128xf32>
    %c0_2 = arith.constant 0 : index
    %c1 = arith.constant 1 : index
    %c0_3 = arith.constant 0 : index
    %3 = vector.load %arg2[%c0_2, %c1, %c0_3] : memref<2x8x128xbf16, #tpu.memory_space<vmem>>, vector<2x1x128xbf16>
    %4 = vector.shape_cast %3 : vector<2x1x128xbf16> to vector<2x128xbf16>
    %5 = arith.extf %4 : vector<2x128xbf16> to vector<2x128xf32>
    %6 = arith.addf %2, %5 : vector<2x128xf32>
    %c0_4 = arith.constant 0 : index
    %c2 = arith.constant 2 : index
    %c0_5 = arith.constant 0 : index
    %7 = vector.load %arg2[%c0_4, %c2, %c0_5] : memref<2x8x128xbf16, #tpu.memory_space<vmem>>, vector<2x1x128xbf16>
    %8 = vector.shape_cast %7 : vector<2x1x128xbf16> to vector<2x128xbf16>
    %9 = arith.extf %8 : vector<2x128xbf16> to vector<2x128xf32>
    %10 = arith.addf %6, %9 : vector<2x128xf32>
    %c0_6 = arith.constant 0 : index
    %c3 = arith.constant 3 : index
    %c0_7 = arith.constant 0 : index
    %11 = vector.load %arg2[%c0_6, %c3, %c0_7] : memref<2x8x128xbf16, #tpu.memory_space<vmem>>, vector<2x1x128xbf16>
    %12 = vector.shape_cast %11 : vector<2x1x128xbf16> to vector<2x128xbf16>
    %13 = arith.extf %12 : vector<2x128xbf16> to vector<2x128xf32>
    %14 = arith.addf %10, %13 : vector<2x128xf32>
    %c0_8 = arith.constant 0 : index
    %c4 = arith.constant 4 : index
    %c0_9 = arith.constant 0 : index
    %15 = vector.load %arg2[%c0_8, %c4, %c0_9] : memref<2x8x128xbf16, #tpu.memory_space<vmem>>, vector<2x1x128xbf16>
    %16 = vector.shape_cast %15 : vector<2x1x128xbf16> to vector<2x128xbf16>
    %17 = arith.extf %16 : vector<2x128xbf16> to vector<2x128xf32>
    %18 = arith.addf %14, %17 : vector<2x128xf32>
    %c0_10 = arith.constant 0 : index
    %c5 = arith.constant 5 : index
    %c0_11 = arith.constant 0 : index
    %19 = vector.load %arg2[%c0_10, %c5, %c0_11] : memref<2x8x128xbf16, #tpu.memory_space<vmem>>, vector<2x1x128xbf16>
    %20 = vector.shape_cast %19 : vector<2x1x128xbf16> to vector<2x128xbf16>
    %21 = arith.extf %20 : vector<2x128xbf16> to vector<2x128xf32>
    %22 = arith.addf %18, %21 : vector<2x128xf32>
    %c0_12 = arith.constant 0 : index
    %c6 = arith.constant 6 : index
    %c0_13 = arith.constant 0 : index
    %23 = vector.load %arg2[%c0_12, %c6, %c0_13] : memref<2x8x128xbf16, #tpu.memory_space<vmem>>, vector<2x1x128xbf16>
    %24 = vector.shape_cast %23 : vector<2x1x128xbf16> to vector<2x128xbf16>
    %25 = arith.extf %24 : vector<2x128xbf16> to vector<2x128xf32>
    %26 = arith.addf %22, %25 : vector<2x128xf32>
    %c0_14 = arith.constant 0 : index
    %c7 = arith.constant 7 : index
    %c0_15 = arith.constant 0 : index
    %27 = vector.load %arg2[%c0_14, %c7, %c0_15] : memref<2x8x128xbf16, #tpu.memory_space<vmem>>, vector<2x1x128xbf16>
    %28 = vector.shape_cast %27 : vector<2x1x128xbf16> to vector<2x128xbf16>
    %29 = arith.extf %28 : vector<2x128xbf16> to vector<2x128xf32>
    %30 = arith.addf %26, %29 : vector<2x128xf32>
    %c0_16 = arith.constant 0 : index
    %c0_17 = arith.constant 0 : index
    %31 = vector.load %arg3[%c0_16, %c0_17] : memref<2x1xf32, #tpu.memory_space<vmem>>, vector<2x1xf32>
    %c0_18 = arith.constant 0 : index
    %c0_19 = arith.constant 0 : index
    %32 = vector.load %arg4[%c0_18, %c0_19] : memref<128x128xf32, #tpu.memory_space<vmem>>, vector<128x128xf32>
    %cst = arith.constant dense<0.000000e+00> : vector<2x128xf32>
    %33 = tpu.matmul %30, %32, %cst {dimension_numbers = #tpu.dot_dimension_numbers<[1], [0], [0], [1], [0, 0, 1, 1], [], []>} : vector<2x128xf32>, vector<128x128xf32>, vector<2x128xf32> -> vector<2x128xf32>
    %c0_20 = arith.constant 0 : index
    %c0_21 = arith.constant 0 : index
    %34 = vector.load %arg5[%c0_20, %c0_21] : memref<1x128xf32, #tpu.memory_space<vmem>>, vector<1x128xf32>
    %35 = vector.broadcast %31 : vector<2x1xf32> to vector<2x128xf32>
    %36 = vector.broadcast %34 : vector<1x128xf32> to vector<2x128xf32>
    %37 = arith.mulf %35, %36 : vector<2x128xf32>
    %38 = arith.addf %33, %37 : vector<2x128xf32>
    %c0_22 = arith.constant 0 : index
    %c0_23 = arith.constant 0 : index
    %39 = vector.load %arg6[%c0_22, %c0_23] : memref<1x128xf32, #tpu.memory_space<vmem>>, vector<1x128xf32>
    %40 = vector.broadcast %39 : vector<1x128xf32> to vector<2x128xf32>
    %41 = arith.addf %38, %40 : vector<2x128xf32>
    %cst_24 = arith.constant 0.000000e+00 : f32
    %42 = vector.broadcast %cst_24 : f32 to vector<2x128xf32>
    %43 = arith.maximumf %41, %42 : vector<2x128xf32>
    %c0_25 = arith.constant 0 : index
    %c0_26 = arith.constant 0 : index
    %44 = vector.load %arg7[%c0_25, %c0_26] : memref<128x160xf32, #tpu.memory_space<vmem>>, vector<128x160xf32>
    %cst_27 = arith.constant dense<0.000000e+00> : vector<2x160xf32>
    %45 = tpu.matmul %43, %44, %cst_27 {dimension_numbers = #tpu.dot_dimension_numbers<[1], [0], [0], [1], [0, 0, 1, 1], [], []>} : vector<2x128xf32>, vector<128x160xf32>, vector<2x160xf32> -> vector<2x160xf32>
    %c0_28 = arith.constant 0 : index
    %c0_29 = arith.constant 0 : index
    %46 = vector.load %arg8[%c0_28, %c0_29] : memref<1x160xf32, #tpu.memory_space<vmem>>, vector<1x160xf32>
    %47 = vector.broadcast %46 : vector<1x160xf32> to vector<2x160xf32>
    %48 = arith.addf %45, %47 : vector<2x160xf32>
    %49 = vector.extract_strided_slice %48 {offsets = [0, 0], sizes = [2, 128], strides = [1, 1]} : vector<2x160xf32> to vector<2x128xf32>
    %50 = vector.extract_strided_slice %48 {offsets = [0, 128], sizes = [2, 32], strides = [1, 1]} : vector<2x160xf32> to vector<2x32xf32>
    %cst_30 = arith.constant 0.000000e+00 : f32
    %51 = vector.broadcast %cst_30 : f32 to vector<2x32xf32>
    %52 = arith.maximumf %50, %51 : vector<2x32xf32>
    %c0_31 = arith.constant 0 : index
    %c0_32 = arith.constant 0 : index
    %53 = vector.load %arg11[%c0_31, %c0_32] : memref<2x128xf32, #tpu.memory_space<vmem>>, vector<2x128xf32>
    tpu.vector_store %arg11[%c0_31, %c0_32], %49 {strides = array<i32>} : memref<2x128xf32, #tpu.memory_space<vmem>>, vector<2x128xf32>,
    %c0_33 = arith.constant 0 : index
    %c0_34 = arith.constant 0 : index
    %54 = vector.load %arg9[%c0_33, %c0_34] : memref<1x32xf32, #tpu.memory_space<vmem>>, vector<1x32xf32>
    %55 = vector.broadcast %54 : vector<1x32xf32> to vector<2x32xf32>
    %56 = arith.mulf %52, %55 : vector<2x32xf32>
    %cst_35 = arith.constant dense<0.000000e+00> : vector<2xf32>
    %57 = vector.multi_reduction <add>, %56, %cst_35 [1] : vector<2x32xf32> to vector<2xf32>
    %58 = vector.shape_cast %57 : vector<2xf32> to vector<2x1xf32>
    %c0_36 = arith.constant 0 : index
    %c0_37 = arith.constant 0 : index
    %59 = memref.load %arg10[%c0_36, %c0_37] : memref<1x1xf32, #tpu.memory_space<smem>>
    %60 = vector.broadcast %59 : f32 to vector<2x1xf32>
    %61 = arith.addf %58, %60 : vector<2x1xf32>
    %62 = arith.negf %61 : vector<2x1xf32>
    %63 = math.exp %62 : vector<2x1xf32>
    %cst_38 = arith.constant 1.000000e+00 : f32
    %64 = vector.broadcast %cst_38 : f32 to vector<2x1xf32>
    %65 = arith.addf %64, %63 : vector<2x1xf32>
    %66 = arith.divf %64, %65 : vector<2x1xf32>
    %c0_39 = arith.constant 0 : index
    %c0_40 = arith.constant 0 : index
    %67 = vector.load %arg12[%c0_39, %c0_40] : memref<2x1xf32, #tpu.memory_space<vmem>>, vector<2x1xf32>
    tpu.vector_store %arg12[%c0_39, %c0_40], %66 {strides = array<i32>} : memref<2x1xf32, #tpu.memory_space<vmem>>, vector<2x1xf32>,
    return
  }
  func.func @transform_0(%arg0: i32, %arg1: i32) -> (i32, i32, i32) {
    %c0_i32 = arith.constant 0 : i32
    %c0_i32_0 = arith.constant 0 : i32
    return %arg0, %arg1, %c0_i32 : i32, i32, i32
  }
  func.func @transform_1(%arg0: i32, %arg1: i32) -> (i32, i32) {
    %c0_i32 = arith.constant 0 : i32
    %c0_i32_0 = arith.constant 0 : i32
    return %arg0, %c0_i32 : i32, i32
  }
  func.func @transform_2(%arg0: i32, %arg1: i32) -> (i32, i32) {
    %c0_i32 = arith.constant 0 : i32
    %c0_i32_0 = arith.constant 0 : i32
    %c0_i32_1 = arith.constant 0 : i32
    return %c0_i32, %c0_i32_0 : i32, i32
  }
  func.func @transform_3(%arg0: i32, %arg1: i32) -> (i32, i32) {
    %c0_i32 = arith.constant 0 : i32
    %c0_i32_0 = arith.constant 0 : i32
    %c0_i32_1 = arith.constant 0 : i32
    return %c0_i32, %c0_i32_0 : i32, i32
  }
  func.func @transform_4(%arg0: i32, %arg1: i32) -> (i32, i32) {
    %c0_i32 = arith.constant 0 : i32
    %c0_i32_0 = arith.constant 0 : i32
    %c0_i32_1 = arith.constant 0 : i32
    return %c0_i32, %c0_i32_0 : i32, i32
  }
  func.func @transform_5(%arg0: i32, %arg1: i32) -> (i32, i32) {
    %c0_i32 = arith.constant 0 : i32
    %c0_i32_0 = arith.constant 0 : i32
    %c0_i32_1 = arith.constant 0 : i32
    return %c0_i32, %c0_i32_0 : i32, i32
  }
  func.func @transform_6(%arg0: i32, %arg1: i32) -> (i32, i32) {
    %c0_i32 = arith.constant 0 : i32
    %c0_i32_0 = arith.constant 0 : i32
    %c0_i32_1 = arith.constant 0 : i32
    return %c0_i32, %c0_i32_0 : i32, i32
  }
  func.func @transform_7(%arg0: i32, %arg1: i32) -> (i32, i32) {
    %c0_i32 = arith.constant 0 : i32
    %c0_i32_0 = arith.constant 0 : i32
    %c0_i32_1 = arith.constant 0 : i32
    return %c0_i32, %c0_i32_0 : i32, i32
  }
  func.func @transform_8(%arg0: i32, %arg1: i32) -> (i32, i32) {
    %c0_i32 = arith.constant 0 : i32
    %c0_i32_0 = arith.constant 0 : i32
    %c0_i32_1 = arith.constant 0 : i32
    return %c0_i32, %c0_i32_0 : i32, i32
  }
  func.func @transform_9(%arg0: i32, %arg1: i32) -> (i32, i32) {
    %c0_i32 = arith.constant 0 : i32
    %c0_i32_0 = arith.constant 0 : i32
    return %arg0, %c0_i32 : i32, i32
  }
  func.func @transform_10(%arg0: i32, %arg1: i32) -> (i32, i32) {
    %c0_i32 = arith.constant 0 : i32
    %c0_i32_0 = arith.constant 0 : i32
    return %arg0, %c0_i32 : i32, i32
  }
}

</mosaic_0001>

<llo_original>
// kernel: tpu_custom_call.1
$region0: #{tpu_custom_call.1}
  #allocation0 [shape = 'u32[]', space=smem, size = 0x4, offset = 0x4, fixed_abs, tag = 'smem constant byte address 0x4 - core index']
  #allocation1 [shape = 'u32[144,128]{1,0:T(1,128)}', space=vmem, size = 0x12000, scoped, tag = 'internal scratch']
  #allocation2 [shape = 'f32[2,128]{1,0:T(2,128)}', space=vmem, size = 0x400, scoped, tag = 'scratch operand']
  #allocation3 [shape = 'f32[1,1]{1,0:T(1,128)S(6)}', space=smem, size = 0x200, scoped, tag = 'scoped memory for tpu_custom_call.1']
  %s0 = inlined_call_operand.vmem [shape: bf16[2,8,128], index: 0, kind: input, shape index: {}]
  %s1 = inlined_call_operand.vmem [shape: f32[2,1], index: 1, kind: input, shape index: {}]
  %s2 = inlined_call_operand.vmem [shape: f32[128,128], index: 2, kind: input, shape index: {}]
  %s3 = inlined_call_operand.vmem [shape: f32[1,128], index: 3, kind: input, shape index: {}]
  %s4 = inlined_call_operand.vmem [shape: f32[1,128], index: 4, kind: input, shape index: {}]
  %s5 = inlined_call_operand.vmem [shape: f32[128,160], index: 5, kind: input, shape index: {}]
  %s6 = inlined_call_operand.vmem [shape: f32[1,160], index: 6, kind: input, shape index: {}]
  %s7 = inlined_call_operand.vmem [shape: f32[1,32], index: 7, kind: input, shape index: {}]
  %s8 = inlined_call_operand.<no memory space> [shape: f32[1,1], index: 8, kind: input, shape index: {}]
  %s9 = inlined_call_operand.hbm [shape: f32[2,128], index: 9, kind: output, shape index: {0}]
  %s10 = inlined_call_operand.vmem [shape: f32[2,1], index: 10, kind: output, shape index: {1}]
  %11 = xla_tuple %s9, %s10
  %s12 = sld [smem:[#allocation0]]
  $region54: #{tpu_custom_call.1} parent=0
    _
  %s14 = ssub.s32 1, %s12
  %s15 = scalar_select 0, %s14, %s12
  %16 = sst [smem:[#allocation3]] %s8
  $region1: #{tpu_custom_call.1} parent=0
    #allocation4 [shape = 'u8[1024]{0}', space=vmem, size = 0x400, scoped, tag = 'output window, operand 0, single buffered']
    #allocation5 [shape = 's32[1]{0}', space=sflag, size = 0x4, scoped, tag = 'scoped memory for tpu_custom_call.1']
    %17 = vsyncpa [#allocation5], 0
    // Predicated region
    $region2: #{tpu_custom_call.1} parent=1 // pred_check
      _
    $region3: #{tpu_custom_call.1} parent=1 // pred_check_branch
      %19 = sbr.rel (0) target = $region5
    $region4: #{tpu_custom_call.1} parent=1 // pred_region
      _
    $region5: #{tpu_custom_call.1} parent=1 // pred_fallthru
      _
    // Predicated region
    $region6: #{tpu_custom_call.1} parent=1 // pred_check
      _
    $region7: #{tpu_custom_call.1} parent=1 // pred_check_branch
      %21 = sbr.rel (0) target = $region9
    $region8: #{tpu_custom_call.1} parent=1 // pred_region
      _
    $region9: #{tpu_custom_call.1} parent=1 // pred_fallthru
      _
    // Predicated region
    $region10: #{tpu_custom_call.1} parent=1 // pred_check
      _
    $region11: #{tpu_custom_call.1} parent=1 // pred_check_branch
      %23 = sbr.rel (0) target = $region13
    $region12: #{tpu_custom_call.1} parent=1 // pred_region
      _
    $region13: #{tpu_custom_call.1} parent=1 // pred_fallthru
      _
    // Predicated region
    $region14: #{tpu_custom_call.1} parent=1 // pred_check
      _
    $region15: #{tpu_custom_call.1} parent=1 // pred_check_branch
      %25 = sbr.rel (0) target = $region17
    $region16: #{tpu_custom_call.1} parent=1 // pred_region
      _
    $region17: #{tpu_custom_call.1} parent=1 // pred_fallthru
      _
    // Predicated region
    $region18: #{tpu_custom_call.1} parent=1 // pred_check
      _
    $region19: #{tpu_custom_call.1} parent=1 // pred_check_branch
      %27 = sbr.rel (0) target = $region21
    $region20: #{tpu_custom_call.1} parent=1 // pred_region
      _
    $region21: #{tpu_custom_call.1} parent=1 // pred_fallthru
      _
    // Predicated region
    $region22: #{tpu_custom_call.1} parent=1 // pred_check
      _
    $region23: #{tpu_custom_call.1} parent=1 // pred_check_branch
      %29 = sbr.rel (0) target = $region25
    $region24: #{tpu_custom_call.1} parent=1 // pred_region
      _
    $region25: #{tpu_custom_call.1} parent=1 // pred_fallthru
      _
    // Predicated region
    $region26: #{tpu_custom_call.1} parent=1 // pred_check
      _
    $region27: #{tpu_custom_call.1} parent=1 // pred_check_branch
      %31 = sbr.rel (0) target = $region29
    $region28: #{tpu_custom_call.1} parent=1 // pred_region
      _
    $region29: #{tpu_custom_call.1} parent=1 // pred_fallthru
      _
    // Predicated region
    $region30: #{tpu_custom_call.1} parent=1 // pred_check
      _
    $region31: #{tpu_custom_call.1} parent=1 // pred_check_branch
      %33 = sbr.rel (0) target = $region33
    $region32: #{tpu_custom_call.1} parent=1 // pred_region
      _
    $region33: #{tpu_custom_call.1} parent=1 // pred_fallthru
      _
    // Predicated region
    $region34: #{tpu_custom_call.1} parent=1 // pred_check
      _
    $region35: #{tpu_custom_call.1} parent=1 // pred_check_branch
      %35 = sbr.rel (0) target = $region37
    $region36: #{tpu_custom_call.1} parent=1 // pred_region
      _
    $region37: #{tpu_custom_call.1} parent=1 // pred_fallthru
      _
    %v36 = vld [vmem:[%s0] sm:$0x1]
    %v37 = vld [vmem:[%s0 + $0x4] sm:$0x1]
    %v38 = vunpack.c.l.bf16 %v36
    %v39 = vunpack.c.l.bf16 %v37
    %v42 = vrot.slane %v38, 1
    %v43 = vrot.slane %v39, 1
    %v46 = vadd.f32 %v38, %v42
    %v47 = vadd.f32 %v39, %v43
    %v48 = vld [vmem:[%s0] sm:$0x2]
    %v49 = vld [vmem:[%s0 + $0x4] sm:$0x2]
    %v50 = vunpack.c.l.bf16 %v48
    %v51 = vunpack.c.l.bf16 %v49
    %v54 = vrot.slane %v50, 2
    %v55 = vrot.slane %v51, 2
    %v58 = vadd.f32 %v46, %v54
    %v59 = vadd.f32 %v47, %v55
    %v60 = vrot.slane %v50, 3
    %v61 = vrot.slane %v51, 3
    %v64 = vadd.f32 %v58, %v60
    %v65 = vadd.f32 %v59, %v61
    %v66 = vld [vmem:[%s0] sm:$0x4]
    %v67 = vld [vmem:[%s0 + $0x4] sm:$0x4]
    %v68 = vunpack.c.l.bf16 %v66
    %v69 = vunpack.c.l.bf16 %v67
    %v72 = vrot.slane %v68, 4
    %v73 = vrot.slane %v69, 4
    %v76 = vadd.f32 %v64, %v72
    %v77 = vadd.f32 %v65, %v73
    %v78 = vrot.slane %v68, 5
    %v79 = vrot.slane %v69, 5
    %v82 = vadd.f32 %v76, %v78
    %v83 = vadd.f32 %v77, %v79
    %v84 = vld [vmem:[%s0] sm:$0x8]
    %v85 = vld [vmem:[%s0 + $0x4] sm:$0x8]
    %v86 = vunpack.c.l.bf16 %v84
    %v87 = vunpack.c.l.bf16 %v85
    %v90 = vrot.slane %v86, 6
    %v91 = vrot.slane %v87, 6
    %v94 = vadd.f32 %v82, %v90
    %v95 = vadd.f32 %v83, %v91
    %v96 = vrot.slane %v86, 7
    %v97 = vrot.slane %v87, 7
    %v100 = vadd.f32 %v94, %v96
    %v101 = vadd.f32 %v95, %v97
    %v102 = vld [vmem:[%s1] sm:$0x3]
    %v103 = vld [vmem:[%s2] sm:$0xff]
    %v104 = vld [vmem:[%s2 + $0x8] sm:$0xff]
    %v105 = vld [vmem:[%s2 + $0x10] sm:$0xff]
    %v106 = vld [vmem:[%s2 + $0x18] sm:$0xff]
    %v107 = vld [vmem:[%s2 + $0x20] sm:$0xff]
    %v108 = vld [vmem:[%s2 + $0x28] sm:$0xff]
    %v109 = vld [vmem:[%s2 + $0x30] sm:$0xff]
    %v110 = vld [vmem:[%s2 + $0x38] sm:$0xff]
    %v111 = vld [vmem:[%s2 + $0x40] sm:$0xff]
    %v112 = vld [vmem:[%s2 + $0x48] sm:$0xff]
    %v113 = vld [vmem:[%s2 + $0x50] sm:$0xff]
    %v114 = vld [vmem:[%s2 + $0x58] sm:$0xff]
    %v115 = vld [vmem:[%s2 + $0x60] sm:$0xff]
    %v116 = vld [vmem:[%s2 + $0x68] sm:$0xff]
    %v117 = vld [vmem:[%s2 + $0x70] sm:$0xff]
    %v118 = vld [vmem:[%s2 + $0x78] sm:$0xff]
    %v119 = vld [vmem:[%s3] sm:$0x1]
    %121 = vset.pattern.permute.xlu0 0
    %122 = vperm.xlu0 %121, %v102
    %v123 = vpop.permute.xlu0 %122
    %v126 = vlaneseq
    %v127 = vshrl.u32 %v126, 7
    %v128 = vsub.s32 0, %v127
    %v129 = vrot.slane %v119, %v128
    %v131 = vmul.f32 %v123, %v129
    %v134 = vrot.slane %v101, 7
    %vm135 = vcmask 1041409
    %v136 = vsel %vm135, %v134, %v100
    %138 = vmatprep.subr.mxu0 0.0
    %139 = vmatpush1.msra.mxu0 %v118
    %140 = vmatprep.subr.mxu0 0.0
    %141 = vmatpush1.msra.mxu0 %v117
    %142 = vmatprep.subr.mxu0 0.0
    %143 = vmatpush1.msra.mxu0 %v116
    %144 = vmatprep.subr.mxu0 0.0
    %145 = vmatpush1.msra.mxu0 %v115
    %146 = vmatprep.subr.mxu0 0.0
    %147 = vmatpush1.msra.mxu0 %v114
    %148 = vmatprep.subr.mxu0 0.0
    %149 = vmatpush1.msra.mxu0 %v113
    %150 = vmatprep.subr.mxu0 0.0
    %151 = vmatpush1.msra.mxu0 %v112
    %152 = vmatprep.subr.mxu0 0.0
    %153 = vmatpush1.msra.mxu0 %v111
    %154 = vmatprep.subr.mxu0 0.0
    %155 = vmatpush1.msra.mxu0 %v110
    %156 = vmatprep.subr.mxu0 0.0
    %157 = vmatpush1.msra.mxu0 %v109
    %158 = vmatprep.subr.mxu0 0.0
    %159 = vmatpush1.msra.mxu0 %v108
    %160 = vmatprep.subr.mxu0 0.0
    %161 = vmatpush1.msra.mxu0 %v107
    %162 = vmatprep.subr.mxu0 0.0
    %163 = vmatpush1.msra.mxu0 %v106
    %164 = vmatprep.subr.mxu0 0.0
    %165 = vmatpush1.msra.mxu0 %v105
    %166 = vmatprep.subr.mxu0 0.0
    %167 = vmatpush1.msra.mxu0 %v104
    %168 = vmatprep.subr.mxu0 0.0
    %169 = vmatpush1.msra.mxu0 %v103
    %170 = vmatprep.subr.mxu0 0.0
    %171 = vmatpush2.msra.mxu0 0.0
    %172 = vmatprep.subr.mxu0 0.0
    %173 = vmatpush2.msra.mxu0 0.0
    %174 = vmatprep.subr.mxu0 0.0
    %175 = vmatpush2.msra.mxu0 0.0
    %176 = vmatprep.subr.mxu0 0.0
    %177 = vmatpush2.msra.mxu0 0.0
    %178 = vmatprep.subr.mxu0 0.0
    %179 = vmatpush2.msra.mxu0 0.0
    %180 = vmatprep.subr.mxu0 0.0
    %181 = vmatpush2.msra.mxu0 0.0
    %182 = vmatprep.subr.mxu0 0.0
    %183 = vmatpush2.msra.mxu0 0.0
    %184 = vmatprep.subr.mxu0 0.0
    %185 = vmatpush2.msra.mxu0 0.0
    %186 = vmatprep.subr.mxu0 0.0
    %187 = vmatpush2.msra.mxu0 0.0
    %188 = vmatprep.subr.mxu0 0.0
    %189 = vmatpush2.msra.mxu0 0.0
    %190 = vmatprep.subr.mxu0 0.0
    %191 = vmatpush2.msra.mxu0 0.0
    %192 = vmatprep.subr.mxu0 0.0
    %193 = vmatpush2.msra.mxu0 0.0
    %194 = vmatprep.subr.mxu0 0.0
    %195 = vmatpush2.msra.mxu0 0.0
    %196 = vmatprep.subr.mxu0 0.0
    %197 = vmatpush2.msra.mxu0 0.0
    %198 = vmatprep.subr.mxu0 0.0
    %199 = vmatpush2.msra.mxu0 0.0
    %200 = vmatprep.subr.mxu0 0.0
    %201 = vmatpush2.msra.mxu0 0.0
    %202 = vmatprep.mubr.f32.mxu0 0.0
    %203 = vmatmul.mubr.f32.gmra.mxu0 %v136
    %v204 = vpop.f32.mrf.mxu0
    %v205 = vadd.f32 %v131, %v204
    %v206 = vpop.f32.mrf.mxu0
    %207 = vdwg.mxu0
    %v208 = vld [vmem:[%s4] sm:$0x1]
    %v210 = vlaneseq
    %v211 = vshrl.u32 %v210, 7
    %v212 = vsub.s32 0, %v211
    %v213 = vrot.slane %v208, %v212
    %v215 = vadd.f32 %v205, %v213
    %v216 = vmax.f32 %v215, 0.0
    %v217 = vld [vmem:[%s5] sm:$0xff]
    %v218 = vld [vmem:[%s5 + $0x8] sm:$0xff]
    %v219 = vld [vmem:[%s5 + $0x10] sm:$0xff]
    %v220 = vld [vmem:[%s5 + $0x18] sm:$0xff]
    %v221 = vld [vmem:[%s5 + $0x20] sm:$0xff]
    %v222 = vld [vmem:[%s5 + $0x28] sm:$0xff]
    %v223 = vld [vmem:[%s5 + $0x30] sm:$0xff]
    %v224 = vld [vmem:[%s5 + $0x38] sm:$0xff]
    %v225 = vld [vmem:[%s5 + $0x40] sm:$0xff]
    %v226 = vld [vmem:[%s5 + $0x48] sm:$0xff]
    %v227 = vld [vmem:[%s5 + $0x50] sm:$0xff]
    %v228 = vld [vmem:[%s5 + $0x58] sm:$0xff]
    %v229 = vld [vmem:[%s5 + $0x60] sm:$0xff]
    %v230 = vld [vmem:[%s5 + $0x68] sm:$0xff]
    %v231 = vld [vmem:[%s5 + $0x70] sm:$0xff]
    %v232 = vld [vmem:[%s5 + $0x78] sm:$0xff]
    %v233 = vld [vmem:[%s5 + $0x80] sm:$0xff]
    %v234 = vld [vmem:[%s5 + $0x88] sm:$0xff]
    %v235 = vld [vmem:[%s5 + $0x90] sm:$0xff]
    %v236 = vld [vmem:[%s5 + $0x98] sm:$0xff]
    %v237 = vld [vmem:[%s5 + $0xa0] sm:$0xff]
    %v238 = vld [vmem:[%s5 + $0xa8] sm:$0xff]
    %v239 = vld [vmem:[%s5 + $0xb0] sm:$0xff]
    %v240 = vld [vmem:[%s5 + $0xb8] sm:$0xff]
    %v241 = vld [vmem:[%s5 + $0xc0] sm:$0xff]
    %v242 = vld [vmem:[%s5 + $0xc8] sm:$0xff]
    %v243 = vld [vmem:[%s5 + $0xd0] sm:$0xff]
    %v244 = vld [vmem:[%s5 + $0xd8] sm:$0xff]
    %v245 = vld [vmem:[%s5 + $0xe0] sm:$0xff]
    %v246 = vld [vmem:[%s5 + $0xe8] sm:$0xff]
    %v247 = vld [vmem:[%s5 + $0xf0] sm:$0xff]
    %v248 = vld [vmem:[%s5 + $0xf8] sm:$0xff]
    %v249 = vld [vmem:[%s6] sm:$0x3]
    %v251 = vlaneseq
    %v252 = vshrl.u32 %v251, 7
    %v253 = vsub.s32 0, %v252
    %v254 = vrot.slane %v249, %v253
    %v255 = vlaneseq
    %v256 = vshrl.u32 %v255, 7
    %v257 = vsub.s32 1, %v256
    %v258 = vrot.slane %v249, %v257
    %261 = vmatprep.subr.mxu0 %v248
    %262 = vmatpush1.msra.mxu0 %v247
    %263 = vmatprep.subr.mxu0 %v246
    %264 = vmatpush1.msra.mxu0 %v245
    %265 = vmatprep.subr.mxu0 %v244
    %266 = vmatpush1.msra.mxu0 %v243
    %267 = vmatprep.subr.mxu0 %v242
    %268 = vmatpush1.msra.mxu0 %v241
    %269 = vmatprep.subr.mxu0 %v240
    %270 = vmatpush1.msra.mxu0 %v239
    %271 = vmatprep.subr.mxu0 %v238
    %272 = vmatpush1.msra.mxu0 %v237
    %273 = vmatprep.subr.mxu0 %v236
    %274 = vmatpush1.msra.mxu0 %v235
    %275 = vmatprep.subr.mxu0 %v234
    %276 = vmatpush1.msra.mxu0 %v233
    %277 = vmatprep.subr.mxu0 %v232
    %278 = vmatpush1.msra.mxu0 %v231
    %279 = vmatprep.subr.mxu0 %v230
    %280 = vmatpush1.msra.mxu0 %v229
    %281 = vmatprep.subr.mxu0 %v228
    %282 = vmatpush1.msra.mxu0 %v227
    %283 = vmatprep.subr.mxu0 %v226
    %284 = vmatpush1.msra.mxu0 %v225
    %285 = vmatprep.subr.mxu0 %v224
    %286 = vmatpush1.msra.mxu0 %v223
    %287 = vmatprep.subr.mxu0 %v222
    %288 = vmatpush1.msra.mxu0 %v221
    %289 = vmatprep.subr.mxu0 %v220
    %290 = vmatpush1.msra.mxu0 %v219
    %291 = vmatprep.subr.mxu0 %v218
    %292 = vmatpush1.msra.mxu0 %v217
    %293 = vmatprep.subr.mxu0 0.0
    %294 = vmatpush2.msra.mxu0 0.0
    %295 = vmatprep.subr.mxu0 0.0
    %296 = vmatpush2.msra.mxu0 0.0
    %297 = vmatprep.subr.mxu0 0.0
    %298 = vmatpush2.msra.mxu0 0.0
    %299 = vmatprep.subr.mxu0 0.0
    %300 = vmatpush2.msra.mxu0 0.0
    %301 = vmatprep.subr.mxu0 0.0
    %302 = vmatpush2.msra.mxu0 0.0
    %303 = vmatprep.subr.mxu0 0.0
    %304 = vmatpush2.msra.mxu0 0.0
    %305 = vmatprep.subr.mxu0 0.0
    %306 = vmatpush2.msra.mxu0 0.0
    %307 = vmatprep.subr.mxu0 0.0
    %308 = vmatpush2.msra.mxu0 0.0
    %309 = vmatprep.subr.mxu0 0.0
    %310 = vmatpush2.msra.mxu0 0.0
    %311 = vmatprep.subr.mxu0 0.0
    %312 = vmatpush2.msra.mxu0 0.0
    %313 = vmatprep.subr.mxu0 0.0
    %314 = vmatpush2.msra.mxu0 0.0
    %315 = vmatprep.subr.mxu0 0.0
    %316 = vmatpush2.msra.mxu0 0.0
    %317 = vmatprep.subr.mxu0 0.0
    %318 = vmatpush2.msra.mxu0 0.0
    %319 = vmatprep.subr.mxu0 0.0
    %320 = vmatpush2.msra.mxu0 0.0
    %321 = vmatprep.subr.mxu0 0.0
    %322 = vmatpush2.msra.mxu0 0.0
    %323 = vmatprep.subr.mxu0 0.0
    %324 = vmatpush2.msra.mxu0 0.0
    %325 = vmatprep.mubr.f32.mxu0 0.0
    %326 = vmatmul.mubr.f32.gmra.mxu0 %v216
    %v327 = vpop.f32.mrf.mxu0
    %v328 = vadd.f32 %v254, %v327
    %v329 = vpop.f32.mrf.mxu0
    %v330 = vadd.f32 %v258, %v329
    %331 = vdwg.mxu0
    %v332 = vmax.f32 %v330, 0.0
    %333 = vst [vmem:[#allocation4] sm:$0x3] %v328
    %v334 = vld [vmem:[%s7] sm:$0x1]
    %v336 = vlaneseq
    %v337 = vshrl.u32 %v336, 7
    %v338 = vsub.s32 0, %v337
    %v339 = vrot.slane %v334, %v338
    %v341 = vmul.f32 %v332, %v339
    %vm342 = vcmask 254976
    %v343 = vsel %vm342, %v341, 0.0
    %344 = vadd.xlane.f32.xlu0 %v343
    %v345 = vpop.xlane.xlu0 %344
    %s346 = sld [smem:[#allocation3]]
    %v347 = vstv %s346
    %v348 = vadd.f32 %v345, %v347
    %v349 = vxor.u32 %v348, 2147483648
    %v350 = vmul.f32 %v349, 1.442695
    %v351 = vpow.pop %v350
    %v352 = vadd.f32 %v351, 1.0
    %v353 = vrcp.pop %v352
    %v354 = vmul.f32 1.0, %v353
    %vm355 = vcmask 1024
    %356 = vst.msk [vmem:[%s10] sm:$0x3] %vm355, %v354
    // Predicated region
    $region38: #{tpu_custom_call.1} parent=1 // pred_check
      _
    $region39: #{tpu_custom_call.1} parent=1 // pred_check_branch
      %358 = sbr.rel (0) target = $region41
    $region40: #{tpu_custom_call.1} parent=1 // pred_region
      %s360 = ssub.s32 32, 32
      %361 = vsyncadd [#allocation5], %s360
      %s363 = sshll.u32 [#allocation4], 4
      %s364 = int_to_ptr.vmem [resolvable:$true] %s363
      %366 = dma.vmem_to_hbm [thread:$0]  %s364, 32, %s9, [#allocation5]
    $region41: #{tpu_custom_call.1} parent=1 // pred_fallthru
      _
    // Predicated region
    $region42: #{tpu_custom_call.1} parent=1 // pred_check
      _
    $region43: #{tpu_custom_call.1} parent=1 // pred_check_branch
      %368 = sbr.rel (0) target = $region45
    $region44: #{tpu_custom_call.1} parent=1 // pred_region
      _
    $region45: #{tpu_custom_call.1} parent=1 // pred_fallthru
      _
    // Predicated region
    $region46: #{tpu_custom_call.1} parent=1 // pred_check
      _
    $region47: #{tpu_custom_call.1} parent=1 // pred_check_branch
      %370 = sbr.rel (0) target = $region49
    $region48: #{tpu_custom_call.1} parent=1 // pred_region
      %371 = dma.done [#allocation5], 32
    $region49: #{tpu_custom_call.1} parent=1 // pred_fallthru
      _
    // Predicated region
    $region50: #{tpu_custom_call.1} parent=1 // pred_check
      _
    $region51: #{tpu_custom_call.1} parent=1 // pred_check_branch
      %373 = sbr.rel (0) target = $region53
    $region52: #{tpu_custom_call.1} parent=1 // pred_region
      _
    $region53: #{tpu_custom_call.1} parent=1 // pred_fallthru
      _
    %374 = vsyncpa [#allocation5], 1

</llo_original>
